<compile_context>
chip_gen: v6e
topology: v6e:2x2x1
jax: 0.10.0
libtpu: 0.0.40
codegen_flags: <defaults>
</compile_context>

<pallas_src>
import jax
import jax.numpy as jnp
from jax.experimental import pallas as pl
from jax.experimental.pallas import tpu as pltpu

_MIB = 1024 * 1024
_TINY_SLAB_BYTES = 512 * 1024  # below this, a single block is fine


def _bias_kernel(alpha_ref, beta_ref, x_ref, o_ref):
    # alpha_ref / beta_ref: f32 SMEM scalars.  x_ref / o_ref: VMEM tiles.
    a = alpha_ref[0]
    b = beta_ref[0]
    o_ref[...] = (a * x_ref[...].astype(jnp.float32) + b).astype(o_ref.dtype)


def _sublane_pack(dtype) -> int:
    bits = jnp.dtype(dtype).itemsize * 8
    if bits >= 32:
        return 8
    if bits == 16:
        return 16
    return 32


def _pick_lanes(total: int) -> int:
    for cand in (4096, 2048, 1024, 512, 256, 128):
        if total % cand == 0:
            return cand
    return 128


def _tpu_tuning():
    """(target_block_bytes, vmem_limit_bytes) per TPU generation."""
    try:
        vmem_cap = int(pltpu.get_tpu_info().vmem_capacity_bytes)
    except Exception:
        vmem_cap = 0
    if vmem_cap and vmem_cap <= 80 * _MIB:
        # v7x-class: 64 MiB physical VMEM / TC, higher per-TC HBM bandwidth.
        # 8 MiB blocks * 2 streams * 2 buffers = 32 MiB of buffers.
        return 8 * _MIB, 48 * _MIB
    # v5e / v6e (128 MiB physical VMEM).  4 MiB blocks double-buffered for
    # in+out = 16 MiB, which exactly hits v5e's 16 MiB scoped default, so
    # raise the limit explicitly.
    return 4 * _MIB, 32 * _MIB


def _pick_tile_rows(rows, lanes, in_dtype, out_dtype, target_block_bytes):
    sub = _sublane_pack(in_dtype)
    itemsize = max(jnp.dtype(in_dtype).itemsize, jnp.dtype(out_dtype).itemsize)
    row_bytes = lanes * itemsize
    slab_bytes = rows * row_bytes
    if slab_bytes <= _TINY_SLAB_BYTES:
        # Tiny tensor: one full-slab block (full-array block is always legal).
        return rows
    # Rows needed for ~target_block_bytes, rounded to the sublane packing.
    tgt = max(sub, (target_block_bytes // row_bytes) // sub * sub)
    # Keep at least min_steps grid steps so the pipeline double-buffers and,
    # on v7x, both TensorCores get work.
    min_steps = 4 if slab_bytes >= 4 * _TINY_SLAB_BYTES else 2
    cap = max(sub, (rows // min_steps) // sub * sub)
    return min(tgt, cap, rows)


def _run_slab(x2d, alpha32, beta32, out_dtype, tile_rows, vmem_limit_bytes, donate):
    rows, lanes = x2d.shape
    total = rows * lanes
    in_item = jnp.dtype(x2d.dtype).itemsize
    out_item = jnp.dtype(out_dtype).itemsize
    grid = (pl.cdiv(rows, tile_rows),)

    extra = {}
    if donate and x2d.dtype == jnp.dtype(out_dtype):
        # alpha, beta, x -> x is input index 2; alias it with output 0.
        extra["input_output_aliases"] = {2: 0}

    return pl.pallas_call(
        _bias_kernel,
        out_shape=jax.ShapeDtypeStruct((rows, lanes), out_dtype),
        grid_spec=pltpu.PrefetchScalarGridSpec(
            num_scalar_prefetch=0,
            grid=grid,
            in_specs=[
                pl.BlockSpec(memory_space=pltpu.MemorySpace.SMEM),  # alpha (1,) f32
                pl.BlockSpec(memory_space=pltpu.MemorySpace.SMEM),  # beta  (1,) f32
                pl.BlockSpec((tile_rows, lanes), lambda i: (i, 0)),
            ],
            out_specs=pl.BlockSpec((tile_rows, lanes), lambda i: (i, 0)),
        ),
        compiler_params=pltpu.CompilerParams(
            dimension_semantics=("parallel",),
            vmem_limit_bytes=int(vmem_limit_bytes),
        ),
        cost_estimate=pl.CostEstimate(
            flops=2 * total,
            transcendentals=0,
            bytes_accessed=total * (in_item + out_item),
        ),
        **extra,
    )(alpha32, beta32, x2d)


def bias_layer(x, alpha, beta, *, target_block_bytes=None, vmem_limit_bytes=None,
               donate=False):
    """Applies y = alpha * x + beta elementwise (BiasLayer.forward).

    x: any-shaped array (e.g. NCHW conv features).  alpha, beta: shape-(1,)
    float32 parameters.  Output dtype follows PyTorch promotion against the
    float32 parameters (bf16 input -> f32 output).
    """
    orig_shape = x.shape
    total = int(x.size)
    out_dtype = jnp.promote_types(x.dtype, jnp.float32)
    alpha32 = jnp.asarray(alpha, dtype=jnp.float32).reshape(1)
    beta32 = jnp.asarray(beta, dtype=jnp.float32).reshape(1)

    if total == 0:
        return jnp.zeros(orig_shape, out_dtype)

    tuned_block, tuned_limit = _tpu_tuning()
    if target_block_bytes is None:
        target_block_bytes = tuned_block
    if vmem_limit_bytes is None:
        vmem_limit_bytes = tuned_limit

    x_flat = x.reshape(-1)
    rem = total % 128

    if rem == 0:
        # Common case: no padding at all.
        lanes = _pick_lanes(total)
        rows = total // lanes
        x2d = x_flat.reshape(rows, lanes)
        tile_rows = _pick_tile_rows(rows, lanes, x.dtype, out_dtype,
                                    target_block_bytes)
        out2d = _run_slab(x2d, alpha32, beta32, out_dtype, tile_rows,
                          vmem_limit_bytes, donate)
        return out2d.reshape(-1).reshape(orig_shape)

    head = total - rem
    if head == 0:
        # Tiny ragged tensor (< 128 elements): single full-array block.
        out2d = _run_slab(x_flat.reshape(1, total), alpha32, beta32, out_dtype,
                          1, vmem_limit_bytes, False)
        return out2d.reshape(orig_shape)

    # Ragged: 128-aligned head through the kernel, <=127-element tail in jnp.
    # (Avoids the old pad + slice round trip; the tail is negligible traffic.)
    lanes = _pick_lanes(head)
    rows = head // lanes
    head2d = x_flat[:head].reshape(rows, lanes)
    tile_rows = _pick_tile_rows(rows, lanes, x.dtype, out_dtype,
                                target_block_bytes)
    head_out = _run_slab(head2d, alpha32, beta32, out_dtype, tile_rows,
                         vmem_limit_bytes, False).reshape(-1)
    tail = x_flat[head:]
    tail_out = (alpha32[0] * tail.astype(jnp.float32) + beta32[0]).astype(out_dtype)
    return jnp.concatenate([head_out, tail_out]).reshape(orig_shape)


if __name__ == "__main__":
    key = jax.random.PRNGKey(0)
    k1, k2, k3, k4, k5 = jax.random.split(key, 5)

    # Deterministic parameter init matching BiasLayer.__init__:
    #   alpha = ones(1), beta = zeros(1)
    alpha = jnp.ones((1,), dtype=jnp.float32)
    beta = jnp.zeros((1,), dtype=jnp.float32)

    # Small NCHW input consistent with how BiasLayer is used on conv features.
    x = jax.random.normal(k1, (2, 4, 16, 16), dtype=jnp.float32)
    y = jax.block_until_ready(bias_layer(x, alpha, beta))
    assert y.shape == x.shape and y.dtype == jnp.float32
    assert jnp.allclose(y, x, atol=1e-6, rtol=1e-6)

    # Non-trivial params on the same input.
    alpha2 = jnp.array([1.5], dtype=jnp.float32)
    beta2 = jnp.array([-0.25], dtype=jnp.float32)
    y2 = jax.block_until_ready(bias_layer(x, alpha2, beta2))
    assert jnp.allclose(y2, alpha2[0] * x + beta2[0], atol=1e-6, rtol=1e-6)

    # Larger input exercising multi-step row tiling (>= 4 pipelined grid steps).
    xl = jax.random.normal(k2, (8, 64, 64, 64), dtype=jnp.float32)
    yl = jax.block_until_ready(bias_layer(xl, alpha2, beta2))
    assert jnp.allclose(yl, alpha2[0] * xl + beta2[0], atol=1e-6, rtol=1e-6)

    # bf16 input: PyTorch promotion (f32 Parameter * bf16 tensor) -> f32 output.
    xb = jax.random.normal(k3, (2, 4, 16, 16), dtype=jnp.bfloat16)
    yb = jax.block_until_ready(bias_layer(xb, alpha2, beta2))
    refb = alpha2[0] * xb.astype(jnp.float32) + beta2[0]
    assert yb.dtype == jnp.float32
    assert jnp.allclose(yb, refb, atol=1e-5, rtol=1e-5)

    # Ragged size < 128 elements: single full-array block, no padding.
    xr = jax.random.normal(k4, (3, 5, 7), dtype=jnp.float32)
    yr = jax.block_until_ready(bias_layer(xr, alpha2, beta2))
    assert jnp.allclose(yr, alpha2[0] * xr + beta2[0], atol=1e-6, rtol=1e-6)

    # Ragged size > 128 elements: 128-aligned head via kernel + jnp tail.
    xr2 = jax.random.normal(k5, (7, 129), dtype=jnp.float32)
    yr2 = jax.block_until_ready(bias_layer(xr2, alpha2, beta2))
    assert jnp.allclose(yr2, alpha2[0] * xr2 + beta2[0], atol=1e-6, rtol=1e-6)

    print("KERNEL_OK")
</pallas_src>

<mosaic_0001>
module attributes {stable_mosaic.version = 11 : i64} {
  func.func @_bias_kernel(%arg0: i32, %arg1: memref<1xf32, #tpu.memory_space<smem>>, %arg2: memref<1xf32, #tpu.memory_space<smem>>, %arg3: memref<1x2048xf32, #tpu.memory_space<vmem>>, %arg4: memref<1x2048xf32, #tpu.memory_space<vmem>>) attributes {dimension_semantics = [#tpu.dimension_semantics<parallel>], iteration_bounds = array<i64: 1>, scalar_prefetch = 0 : i64, scratch_operands = 0 : i64, tpu.core_type = #tpu.core_type<tc>, window_params = [{transform_indices = @transform_0, window_bounds = array<i64: 1>}, {transform_indices = @transform_1, window_bounds = array<i64: 1>}, {transform_indices = @transform_2, window_bounds = array<i64: 1, 2048>}, {transform_indices = @transform_3, window_bounds = array<i64: 1, 2048>}]} {
    %c0 = arith.constant 0 : index
    %0 = memref.load %arg1[%c0] : memref<1xf32, #tpu.memory_space<smem>>
    %c0_0 = arith.constant 0 : index
    %1 = memref.load %arg2[%c0_0] : memref<1xf32, #tpu.memory_space<smem>>
    %c0_1 = arith.constant 0 : index
    %c0_2 = arith.constant 0 : index
    %2 = vector.load %arg3[%c0_1, %c0_2] : memref<1x2048xf32, #tpu.memory_space<vmem>>, vector<1x2048xf32>
    %3 = vector.broadcast %0 : f32 to vector<1x2048xf32>
    %4 = arith.mulf %3, %2 : vector<1x2048xf32>
    %5 = vector.broadcast %1 : f32 to vector<1x2048xf32>
    %6 = arith.addf %4, %5 : vector<1x2048xf32>
    %c0_3 = arith.constant 0 : index
    %c0_4 = arith.constant 0 : index
    %7 = vector.load %arg4[%c0_3, %c0_4] : memref<1x2048xf32, #tpu.memory_space<vmem>>, vector<1x2048xf32>
    tpu.vector_store %arg4[%c0_3, %c0_4], %6 {strides = array<i32>} : memref<1x2048xf32, #tpu.memory_space<vmem>>, vector<1x2048xf32>,
    return
  }
  func.func @transform_0(%arg0: i32) -> i32 {
    %c0_i32 = arith.constant 0 : i32
    %c0_i32_0 = arith.constant 0 : i32
    return %c0_i32 : i32
  }
  func.func @transform_1(%arg0: i32) -> i32 {
    %c0_i32 = arith.constant 0 : i32
    %c0_i32_0 = arith.constant 0 : i32
    return %c0_i32 : i32
  }
  func.func @transform_2(%arg0: i32) -> (i32, i32) {
    %c0_i32 = arith.constant 0 : i32
    %c0_i32_0 = arith.constant 0 : i32
    return %arg0, %c0_i32 : i32, i32
  }
  func.func @transform_3(%arg0: i32) -> (i32, i32) {
    %c0_i32 = arith.constant 0 : i32
    %c0_i32_0 = arith.constant 0 : i32
    return %arg0, %c0_i32 : i32, i32
  }
}

</mosaic_0001>

<llo_original>
// kernel: tpu_custom_call.1
$region0: #{tpu_custom_call.1}
  #allocation0 [shape = 'u32[]', space=smem, size = 0x4, offset = 0x4, fixed_abs, tag = 'smem constant byte address 0x4 - core index']
  #allocation1 [shape = 'u32[144,128]{1,0:T(1,128)}', space=vmem, size = 0x12000, scoped, tag = 'internal scratch']
  #allocation2 [shape = 'f32[1]{0:T(128)S(6)}', space=smem, size = 0x200, scoped, tag = 'scoped memory for tpu_custom_call.1']
  #allocation3 [shape = 'f32[1]{0:T(128)S(6)}', space=smem, size = 0x200, scoped, tag = 'scoped memory for tpu_custom_call.1']
  %s0 = inlined_call_operand.<no memory space> [shape: f32[1], index: 0, kind: input, shape index: {}]
  %s1 = inlined_call_operand.<no memory space> [shape: f32[1], index: 1, kind: input, shape index: {}]
  %s2 = inlined_call_operand.hbm [shape: f32[1,2048], index: 2, kind: input, shape index: {}]
  %s3 = inlined_call_operand.hbm [shape: f32[1,2048], index: 3, kind: output, shape index: {}]
  %s4 = sld [smem:[#allocation0]]
  $region26: #{tpu_custom_call.1} parent=0
    _
  %s6 = ssub.s32 1, %s4
  %s7 = scalar_select 0, %s6, %s4
  %8 = sst [smem:[#allocation2]] %s0
  %9 = sst [smem:[#allocation3]] %s1
  $region1: #{tpu_custom_call.1} parent=0
    #allocation4 [shape = 'u8[8192]{0}', space=vmem, size = 0x2000, scoped, tag = 'input window, operand 2, single buffered']
    #allocation5 [shape = 's32[1]{0}', space=sflag, size = 0x4, scoped, tag = 'scoped memory for tpu_custom_call.1']
    #allocation6 [shape = 's32[1]{0}', space=sflag, size = 0x4, scoped, tag = 'scoped memory for tpu_custom_call.1']
    #allocation7 [shape = 'u8[8192]{0}', space=vmem, size = 0x2000, scoped, tag = 'output window, operand 0, single buffered']
    %10 = vsyncpa [#allocation5], 0
    %11 = vsyncpa [#allocation6], 0
    // Predicated region
    $region2: #{tpu_custom_call.1} parent=1 // pred_check
      _
    $region3: #{tpu_custom_call.1} parent=1 // pred_check_branch
      %13 = sbr.rel (0) target = $region5
    $region4: #{tpu_custom_call.1} parent=1 // pred_region
      _
    $region5: #{tpu_custom_call.1} parent=1 // pred_fallthru
      _
    // Predicated region
    $region6: #{tpu_custom_call.1} parent=1 // pred_check
      _
    $region7: #{tpu_custom_call.1} parent=1 // pred_check_branch
      %15 = sbr.rel (0) target = $region9
    $region8: #{tpu_custom_call.1} parent=1 // pred_region
      _
    $region9: #{tpu_custom_call.1} parent=1 // pred_fallthru
      _
    // Predicated region
    $region10: #{tpu_custom_call.1} parent=1 // pred_check
      _
    $region11: #{tpu_custom_call.1} parent=1 // pred_check_branch
      %17 = sbr.rel (0) target = $region13
    $region12: #{tpu_custom_call.1} parent=1 // pred_region
      %s19 = ssub.s32 256, 256
      %20 = vsyncadd [#allocation5], %s19
      %s22 = sshll.u32 [#allocation4], 4
      %s23 = int_to_ptr.vmem [resolvable:$true] %s22
      %25 = dma.hbm_to_vmem [thread:$0]  %s2, 256, %s23, [#allocation5]
    $region13: #{tpu_custom_call.1} parent=1 // pred_fallthru
      _
    // Predicated region
    $region14: #{tpu_custom_call.1} parent=1 // pred_check
      _
    $region15: #{tpu_custom_call.1} parent=1 // pred_check_branch
      %27 = sbr.rel (0) target = $region17
    $region16: #{tpu_custom_call.1} parent=1 // pred_region
      %28 = dma.done [#allocation5], 256
    $region17: #{tpu_custom_call.1} parent=1 // pred_fallthru
      _
    %s29 = sld [smem:[#allocation2]]
    %s30 = sld [smem:[#allocation3]]
    %v31 = vld [vmem:[#allocation4] sm:$0xff]
    %v32 = vld [vmem:[#allocation4 + $0x8] sm:$0xff]
    %v33 = vstv %s29
    %v34 = vmul.f32 %v33, %v31
    %v35 = vmul.f32 %v33, %v32
    %v36 = vstv %s30
    %v37 = vadd.f32 %v34, %v36
    %v38 = vadd.f32 %v35, %v36
    %39 = vst [vmem:[#allocation7] sm:$0xff] %v37
    %40 = vst [vmem:[#allocation7 + $0x8] sm:$0xff] %v38
    // Predicated region
    $region18: #{tpu_custom_call.1} parent=1 // pred_check
      _
    $region19: #{tpu_custom_call.1} parent=1 // pred_check_branch
      %42 = sbr.rel (0) target = $region21
    $region20: #{tpu_custom_call.1} parent=1 // pred_region
      %s44 = ssub.s32 256, 256
      %45 = vsyncadd [#allocation6], %s44
      %s47 = sshll.u32 [#allocation7], 4
      %s48 = int_to_ptr.vmem [resolvable:$true] %s47
      %50 = dma.vmem_to_hbm [thread:$0]  %s48, 256, %s3, [#allocation6]
    $region21: #{tpu_custom_call.1} parent=1 // pred_fallthru
      _
    // Predicated region
    $region22: #{tpu_custom_call.1} parent=1 // pred_check
      _
    $region23: #{tpu_custom_call.1} parent=1 // pred_check_branch
      %52 = sbr.rel (0) target = $region25
    $region24: #{tpu_custom_call.1} parent=1 // pred_region
      %53 = dma.done [#allocation6], 256
    $region25: #{tpu_custom_call.1} parent=1 // pred_fallthru
      _
    %54 = vsyncpa [#allocation5], 1
    %55 = vsyncpa [#allocation6], 1

</llo_original>
